<compile_context>
chip_gen: v7x
topology: tpu7x:2x2x1
jax: 0.10.0
libtpu: 0.0.40
codegen_flags: <defaults>
</compile_context>

<pallas_src>
import jax
import jax.numpy as jnp
from jax.experimental import pallas as pl
from jax.experimental.pallas import tpu as pltpu

NODE_FEAT = 200          # src / dst feature width (one-hot node features)
U_FEAT = 81              # global metadata width
OUT_FEAT = 4             # edge_mlp output width
IN_FEAT = NODE_FEAT + NODE_FEAT + 1 + U_FEAT   # 482


def _round_up(x, m):
    return ((x + m - 1) // m) * m


def edge_model_kernel(src_ref, dst_ref, ea_ref, batch_ref, u_ref,
                      w_src_ref, w_dst_ref, w_ea_ref, w_u_ref, b_ref,
                      out_ref):
    te = src_ref.shape[0]
    g_pad = u_ref.shape[0]

    # out = [src | dst | ea | u[batch]] @ W + b, with W split by column-segment.
    acc = jnp.dot(src_ref[...], w_src_ref[...], preferred_element_type=jnp.float32)
    acc = acc + jnp.dot(dst_ref[...], w_dst_ref[...], preferred_element_type=jnp.float32)
    acc = acc + ea_ref[...] * w_ea_ref[...]                     # (te,1) * (1,4) broadcast

    # u[batch] @ w_u  ==  one_hot(batch) @ (u @ w_u); u / w_u are tiny resident blocks,
    # so no (E, 81) gather ever touches HBM.
    u_proj = jnp.dot(u_ref[...], w_u_ref[...],
                     preferred_element_type=jnp.float32)        # (g_pad, 4)
    iota = jax.lax.broadcasted_iota(jnp.int32, (te, g_pad), 1)
    one_hot = (batch_ref[...] == iota).astype(jnp.float32)      # (te, g_pad)
    acc = acc + jnp.dot(one_hot, u_proj, preferred_element_type=jnp.float32)

    acc = acc + b_ref[...]
    out_ref[...] = acc.astype(out_ref.dtype)


def edge_model_forward(src, dst, edge_attr, u, batch, weight, bias, *, te=512):
    """EdgeModel forward.

    Args:
      src, dst:   (E, 200) float32 node features of each edge's endpoints.
      edge_attr:  (E,)     float32 scalar edge attribute.
      u:          (G, 81)  float32 per-graph global features (g.metadata.view(1, -1)).
      batch:      (E,)     int    graph index of each edge (all zeros for one graph).
      weight:     (482, 4) float32 == torch Linear.weight.T  (NOTE: already transposed).
      bias:       (4,)     float32 == torch Linear.bias.
      te:         edge tile (rows per grid step); multiple of 8, default 512
                  (~3.6 MiB of double-buffered VMEM -> safe on v5e/v6e/v7x defaults).
    """
    E = src.shape[0]
    G = u.shape[0]
    assert weight.shape == (IN_FEAT, OUT_FEAT), "weight must be (482, 4) = torch weight.T"
    assert bias.shape == (OUT_FEAT,)

    # Tile / padding bookkeeping (keeps big tiles even for ragged E).
    te = max(8, _round_up(te, 8))
    te = min(te, _round_up(E, 8))
    e_pad = _round_up(E, te)
    g_pad = _round_up(G, 8)

    ea = edge_attr.astype(src.dtype)[:, None]          # (E, 1)
    b2d = batch.astype(jnp.int32)[:, None]             # (E, 1)
    if e_pad != E:
        p = e_pad - E
        src = jnp.pad(src, ((0, p), (0, 0)))
        dst = jnp.pad(dst, ((0, p), (0, 0)))
        ea = jnp.pad(ea, ((0, p), (0, 0)))
        b2d = jnp.pad(b2d, ((0, p), (0, 0)))           # pad index 0 is valid; rows sliced off
    if g_pad != G:
        u = jnp.pad(u, ((0, g_pad - G), (0, 0)))

    # Split the linear weight by concat segment (tiny resident blocks).
    w_src = weight[:NODE_FEAT]                                   # (200, 4)
    w_dst = weight[NODE_FEAT:2 * NODE_FEAT]                      # (200, 4)
    w_ea = weight[2 * NODE_FEAT:2 * NODE_FEAT + 1]               # (1, 4)
    w_u = weight[2 * NODE_FEAT + 1:]                             # (81, 4)
    b2 = bias[None, :]                                           # (1, 4)

    grid = (e_pad // te,)
    tiled = lambda shape: pl.BlockSpec(shape, lambda i: (i, 0))  # streamed along edges
    full = lambda shape: pl.BlockSpec(shape, lambda i: (0, 0))   # resident across steps

    out = pl.pallas_call(
        edge_model_kernel,
        out_shape=jax.ShapeDtypeStruct((e_pad, OUT_FEAT), src.dtype),
        grid_spec=pltpu.PrefetchScalarGridSpec(
            num_scalar_prefetch=0,
            grid=grid,
            in_specs=[
                tiled((te, NODE_FEAT)),       # src stream
                tiled((te, NODE_FEAT)),       # dst stream
                tiled((te, 1)),               # edge_attr stream
                tiled((te, 1)),               # batch (graph index) stream
                full((g_pad, U_FEAT)),        # u, resident
                full((NODE_FEAT, OUT_FEAT)),  # w_src
                full((NODE_FEAT, OUT_FEAT)),  # w_dst
                full((1, OUT_FEAT)),          # w_ea
                full((U_FEAT, OUT_FEAT)),     # w_u
                full((1, OUT_FEAT)),          # bias
            ],
            out_specs=tiled((te, OUT_FEAT)),
        ),
        compiler_params=pltpu.CompilerParams(
            dimension_semantics=("parallel",)),   # edge axis shards across TCs (v7x)
    )(src, dst, ea, b2d, u, w_src, w_dst, w_ea, w_u, b2)

    return out[:E]


def _reference(src, dst, edge_attr, u, batch, weight, bias):
    out = jnp.concatenate(
        [src, dst, edge_attr[:, None], jnp.take(u, batch, axis=0)], axis=1)
    return out @ weight + bias


if __name__ == "__main__":
    key = jax.random.PRNGKey(0)
    k_src, k_dst, k_ea, k_u, k_w, k_b, k_bt = jax.random.split(key, 7)

    # Deterministic Linear(482, 4) params, torch-style U(-1/sqrt(fan_in), +1/sqrt(fan_in)).
    bound = 1.0 / (IN_FEAT ** 0.5)
    weight = jax.random.uniform(k_w, (IN_FEAT, OUT_FEAT), jnp.float32, -bound, bound)
    bias = jax.random.uniform(k_b, (OUT_FEAT,), jnp.float32, -bound, bound)

    # --- Spec-like example: one graph, all edges in graph 0 ---------------------------
    E = 16
    src = jax.random.normal(k_src, (E, NODE_FEAT), dtype=jnp.float32)
    dst = jax.random.normal(k_dst, (E, NODE_FEAT), dtype=jnp.float32)
    edge_attr = jax.random.uniform(k_ea, (E,), dtype=jnp.float32)
    u = jax.random.normal(k_u, (1, U_FEAT), dtype=jnp.float32)   # g.metadata.view(1, -1)
    batch = jnp.zeros((E,), dtype=jnp.int32)

    out = jax.block_until_ready(
        edge_model_forward(src, dst, edge_attr, u, batch, weight, bias))
    ref = _reference(src, dst, edge_attr, u, batch, weight, bias)
    assert out.shape == (E, OUT_FEAT)
    assert jnp.allclose(out, ref, atol=1e-5, rtol=1e-5)

    # --- General path: ragged E (tail padding) + multiple graphs (in-kernel gather) ---
    E2, G2 = 20, 3
    src2 = jax.random.normal(k_src, (E2, NODE_FEAT), dtype=jnp.float32)
    dst2 = jax.random.normal(k_dst, (E2, NODE_FEAT), dtype=jnp.float32)
    ea2 = jax.random.uniform(k_ea, (E2,), dtype=jnp.float32)
    u2 = jax.random.normal(k_u, (G2, U_FEAT), dtype=jnp.float32)
    batch2 = jax.random.randint(k_bt, (E2,), 0, G2, dtype=jnp.int32)

    out2 = jax.block_until_ready(
        edge_model_forward(src2, dst2, ea2, u2, batch2, weight, bias))
    ref2 = _reference(src2, dst2, ea2, u2, batch2, weight, bias)
    assert out2.shape == (E2, OUT_FEAT)
    assert jnp.allclose(out2, ref2, atol=1e-5, rtol=1e-5)

    print("KERNEL_OK")
</pallas_src>

<mosaic_0001>
module attributes {stable_mosaic.version = 11 : i64} {
  func.func @edge_model_kernel(%arg0: i32, %arg1: memref<16x200xf32, #tpu.memory_space<vmem>>, %arg2: memref<16x200xf32, #tpu.memory_space<vmem>>, %arg3: memref<16x1xf32, #tpu.memory_space<vmem>>, %arg4: memref<16x1xi32, #tpu.memory_space<vmem>>, %arg5: memref<8x81xf32, #tpu.memory_space<vmem>>, %arg6: memref<200x4xf32, #tpu.memory_space<vmem>>, %arg7: memref<200x4xf32, #tpu.memory_space<vmem>>, %arg8: memref<1x4xf32, #tpu.memory_space<vmem>>, %arg9: memref<81x4xf32, #tpu.memory_space<vmem>>, %arg10: memref<1x4xf32, #tpu.memory_space<vmem>>, %arg11: memref<16x4xf32, #tpu.memory_space<vmem>>) attributes {dimension_semantics = [#tpu.dimension_semantics<parallel>], iteration_bounds = array<i64: 1>, scalar_prefetch = 0 : i64, scratch_operands = 0 : i64, tpu.core_type = #tpu.core_type<tc>, window_params = [{transform_indices = @transform_0, window_bounds = array<i64: 16, 200>}, {transform_indices = @transform_1, window_bounds = array<i64: 16, 200>}, {transform_indices = @transform_2, window_bounds = array<i64: 16, 1>}, {transform_indices = @transform_3, window_bounds = array<i64: 16, 1>}, {pipeline_mode = #tpu.pipeline_mode<synchronous>, transform_indices = @transform_4, window_bounds = array<i64: 8, 81>}, {pipeline_mode = #tpu.pipeline_mode<synchronous>, transform_indices = @transform_5, window_bounds = array<i64: 200, 4>}, {pipeline_mode = #tpu.pipeline_mode<synchronous>, transform_indices = @transform_6, window_bounds = array<i64: 200, 4>}, {pipeline_mode = #tpu.pipeline_mode<synchronous>, transform_indices = @transform_7, window_bounds = array<i64: 1, 4>}, {pipeline_mode = #tpu.pipeline_mode<synchronous>, transform_indices = @transform_8, window_bounds = array<i64: 81, 4>}, {pipeline_mode = #tpu.pipeline_mode<synchronous>, transform_indices = @transform_9, window_bounds = array<i64: 1, 4>}, {transform_indices = @transform_10, window_bounds = array<i64: 16, 4>}]} {
    %c0 = arith.constant 0 : index
    %c0_0 = arith.constant 0 : index
    %0 = vector.load %arg1[%c0, %c0_0] : memref<16x200xf32, #tpu.memory_space<vmem>>, vector<16x200xf32>
    %c0_1 = arith.constant 0 : index
    %c0_2 = arith.constant 0 : index
    %1 = vector.load %arg6[%c0_1, %c0_2] : memref<200x4xf32, #tpu.memory_space<vmem>>, vector<200x4xf32>
    %cst = arith.constant dense<0.000000e+00> : vector<16x4xf32>
    %2 = tpu.matmul %0, %1, %cst {dimension_numbers = #tpu.dot_dimension_numbers<[1], [0], [0], [1], [0, 0, 1, 1], [], []>} : vector<16x200xf32>, vector<200x4xf32>, vector<16x4xf32> -> vector<16x4xf32>
    %c0_3 = arith.constant 0 : index
    %c0_4 = arith.constant 0 : index
    %3 = vector.load %arg2[%c0_3, %c0_4] : memref<16x200xf32, #tpu.memory_space<vmem>>, vector<16x200xf32>
    %c0_5 = arith.constant 0 : index
    %c0_6 = arith.constant 0 : index
    %4 = vector.load %arg7[%c0_5, %c0_6] : memref<200x4xf32, #tpu.memory_space<vmem>>, vector<200x4xf32>
    %cst_7 = arith.constant dense<0.000000e+00> : vector<16x4xf32>
    %5 = tpu.matmul %3, %4, %cst_7 {dimension_numbers = #tpu.dot_dimension_numbers<[1], [0], [0], [1], [0, 0, 1, 1], [], []>} : vector<16x200xf32>, vector<200x4xf32>, vector<16x4xf32> -> vector<16x4xf32>
    %6 = arith.addf %2, %5 : vector<16x4xf32>
    %c0_8 = arith.constant 0 : index
    %c0_9 = arith.constant 0 : index
    %7 = vector.load %arg3[%c0_8, %c0_9] : memref<16x1xf32, #tpu.memory_space<vmem>>, vector<16x1xf32>
    %c0_10 = arith.constant 0 : index
    %c0_11 = arith.constant 0 : index
    %8 = vector.load %arg8[%c0_10, %c0_11] : memref<1x4xf32, #tpu.memory_space<vmem>>, vector<1x4xf32>
    %9 = vector.broadcast %7 : vector<16x1xf32> to vector<16x4xf32>
    %10 = vector.broadcast %8 : vector<1x4xf32> to vector<16x4xf32>
    %11 = arith.mulf %9, %10 : vector<16x4xf32>
    %12 = arith.addf %6, %11 : vector<16x4xf32>
    %c0_12 = arith.constant 0 : index
    %c0_13 = arith.constant 0 : index
    %13 = vector.load %arg5[%c0_12, %c0_13] : memref<8x81xf32, #tpu.memory_space<vmem>>, vector<8x81xf32>
    %c0_14 = arith.constant 0 : index
    %c0_15 = arith.constant 0 : index
    %14 = vector.load %arg9[%c0_14, %c0_15] : memref<81x4xf32, #tpu.memory_space<vmem>>, vector<81x4xf32>
    %cst_16 = arith.constant dense<0.000000e+00> : vector<8x4xf32>
    %15 = tpu.matmul %13, %14, %cst_16 {dimension_numbers = #tpu.dot_dimension_numbers<[1], [0], [0], [1], [0, 0, 1, 1], [], []>} : vector<8x81xf32>, vector<81x4xf32>, vector<8x4xf32> -> vector<8x4xf32>
    %16 = tpu.iota {dimensions = array<i32: 1>} : vector<16x8xi32>
    %c0_17 = arith.constant 0 : index
    %c0_18 = arith.constant 0 : index
    %17 = vector.load %arg4[%c0_17, %c0_18] : memref<16x1xi32, #tpu.memory_space<vmem>>, vector<16x1xi32>
    %18 = vector.broadcast %17 : vector<16x1xi32> to vector<16x8xi32>
    %19 = arith.cmpi eq, %18, %16 : vector<16x8xi32>
    %20 = arith.extui %19 : vector<16x8xi1> to vector<16x8xi32>
    %21 = arith.sitofp %20 : vector<16x8xi32> to vector<16x8xf32>
    %cst_19 = arith.constant dense<0.000000e+00> : vector<16x4xf32>
    %22 = tpu.matmul %21, %15, %cst_19 {dimension_numbers = #tpu.dot_dimension_numbers<[1], [0], [0], [1], [0, 0, 1, 1], [], []>} : vector<16x8xf32>, vector<8x4xf32>, vector<16x4xf32> -> vector<16x4xf32>
    %23 = arith.addf %12, %22 : vector<16x4xf32>
    %c0_20 = arith.constant 0 : index
    %c0_21 = arith.constant 0 : index
    %24 = vector.load %arg10[%c0_20, %c0_21] : memref<1x4xf32, #tpu.memory_space<vmem>>, vector<1x4xf32>
    %25 = vector.broadcast %24 : vector<1x4xf32> to vector<16x4xf32>
    %26 = arith.addf %23, %25 : vector<16x4xf32>
    %c0_22 = arith.constant 0 : index
    %c0_23 = arith.constant 0 : index
    %27 = vector.load %arg11[%c0_22, %c0_23] : memref<16x4xf32, #tpu.memory_space<vmem>>, vector<16x4xf32>
    tpu.vector_store %arg11[%c0_22, %c0_23], %26 {strides = array<i32>} : memref<16x4xf32, #tpu.memory_space<vmem>>, vector<16x4xf32>,
    return
  }
  func.func @transform_0(%arg0: i32) -> (i32, i32) {
    %c0_i32 = arith.constant 0 : i32
    %c0_i32_0 = arith.constant 0 : i32
    return %arg0, %c0_i32 : i32, i32
  }
  func.func @transform_1(%arg0: i32) -> (i32, i32) {
    %c0_i32 = arith.constant 0 : i32
    %c0_i32_0 = arith.constant 0 : i32
    return %arg0, %c0_i32 : i32, i32
  }
  func.func @transform_2(%arg0: i32) -> (i32, i32) {
    %c0_i32 = arith.constant 0 : i32
    %c0_i32_0 = arith.constant 0 : i32
    return %arg0, %c0_i32 : i32, i32
  }
  func.func @transform_3(%arg0: i32) -> (i32, i32) {
    %c0_i32 = arith.constant 0 : i32
    %c0_i32_0 = arith.constant 0 : i32
    return %arg0, %c0_i32 : i32, i32
  }
  func.func @transform_4(%arg0: i32) -> (i32, i32) {
    %c0_i32 = arith.constant 0 : i32
    %c0_i32_0 = arith.constant 0 : i32
    %c0_i32_1 = arith.constant 0 : i32
    return %c0_i32, %c0_i32_0 : i32, i32
  }
  func.func @transform_5(%arg0: i32) -> (i32, i32) {
    %c0_i32 = arith.constant 0 : i32
    %c0_i32_0 = arith.constant 0 : i32
    %c0_i32_1 = arith.constant 0 : i32
    return %c0_i32, %c0_i32_0 : i32, i32
  }
  func.func @transform_6(%arg0: i32) -> (i32, i32) {
    %c0_i32 = arith.constant 0 : i32
    %c0_i32_0 = arith.constant 0 : i32
    %c0_i32_1 = arith.constant 0 : i32
    return %c0_i32, %c0_i32_0 : i32, i32
  }
  func.func @transform_7(%arg0: i32) -> (i32, i32) {
    %c0_i32 = arith.constant 0 : i32
    %c0_i32_0 = arith.constant 0 : i32
    %c0_i32_1 = arith.constant 0 : i32
    return %c0_i32, %c0_i32_0 : i32, i32
  }
  func.func @transform_8(%arg0: i32) -> (i32, i32) {
    %c0_i32 = arith.constant 0 : i32
    %c0_i32_0 = arith.constant 0 : i32
    %c0_i32_1 = arith.constant 0 : i32
    return %c0_i32, %c0_i32_0 : i32, i32
  }
  func.func @transform_9(%arg0: i32) -> (i32, i32) {
    %c0_i32 = arith.constant 0 : i32
    %c0_i32_0 = arith.constant 0 : i32
    %c0_i32_1 = arith.constant 0 : i32
    return %c0_i32, %c0_i32_0 : i32, i32
  }
  func.func @transform_10(%arg0: i32) -> (i32, i32) {
    %c0_i32 = arith.constant 0 : i32
    %c0_i32_0 = arith.constant 0 : i32
    return %arg0, %c0_i32 : i32, i32
  }
}

</mosaic_0001>

<llo_original>
// kernel: tpu_custom_call.1
$region0: #{tpu_custom_call.1}
  #allocation0 [shape = 'u32[]', space=smem, size = 0x4, offset = 0x4, fixed_abs, tag = 'smem constant byte address 0x4 - core index']
  #allocation1 [shape = 'u32[144,128]{1,0:T(1,128)}', space=vmem, size = 0x12000, scoped, tag = 'internal scratch']
  %s0 = inlined_call_operand.vmem [shape: f32[16,200], index: 0, kind: input, shape index: {}]
  %s1 = inlined_call_operand.vmem [shape: f32[16,200], index: 1, kind: input, shape index: {}]
  %s2 = inlined_call_operand.vmem [shape: f32[16,1], index: 2, kind: input, shape index: {}]
  %s3 = inlined_call_operand.vmem [shape: s32[16,1], index: 3, kind: input, shape index: {}]
  %s4 = inlined_call_operand.vmem [shape: f32[8,81], index: 4, kind: input, shape index: {}]
  %s5 = inlined_call_operand.vmem [shape: f32[200,4], index: 5, kind: input, shape index: {}]
  %s6 = inlined_call_operand.vmem [shape: f32[200,4], index: 6, kind: input, shape index: {}]
  %s7 = inlined_call_operand.vmem [shape: f32[1,4], index: 7, kind: input, shape index: {}]
  %s8 = inlined_call_operand.vmem [shape: f32[81,4], index: 8, kind: input, shape index: {}]
  %s9 = inlined_call_operand.vmem [shape: f32[1,4], index: 9, kind: input, shape index: {}]
  %s10 = inlined_call_operand.vmem [shape: f32[16,4], index: 10, kind: output, shape index: {}]
  %s11 = sld [smem:[#allocation0]]
  $region50: #{tpu_custom_call.1} parent=0
    _
  %s13 = ssub.s32 1, %s11
  %s14 = scalar_select 0, %s13, %s11
  // Predicated region
  $region2: #{tpu_custom_call.1} parent=0 // pred_check
    _
  $region3: #{tpu_custom_call.1} parent=0 // pred_check_branch
    %16 = sbr.rel (0) target = $region5
  $region4: #{tpu_custom_call.1} parent=0 // pred_region
    _
  $region5: #{tpu_custom_call.1} parent=0 // pred_fallthru
    _
  // Predicated region
  $region6: #{tpu_custom_call.1} parent=0 // pred_check
    _
  $region7: #{tpu_custom_call.1} parent=0 // pred_check_branch
    %18 = sbr.rel (0) target = $region9
  $region8: #{tpu_custom_call.1} parent=0 // pred_region
    _
  $region9: #{tpu_custom_call.1} parent=0 // pred_fallthru
    _
  // Predicated region
  $region10: #{tpu_custom_call.1} parent=0 // pred_check
    _
  $region11: #{tpu_custom_call.1} parent=0 // pred_check_branch
    %20 = sbr.rel (0) target = $region13
  $region12: #{tpu_custom_call.1} parent=0 // pred_region
    _
  $region13: #{tpu_custom_call.1} parent=0 // pred_fallthru
    _
  // Predicated region
  $region14: #{tpu_custom_call.1} parent=0 // pred_check
    _
  $region15: #{tpu_custom_call.1} parent=0 // pred_check_branch
    %22 = sbr.rel (0) target = $region17
  $region16: #{tpu_custom_call.1} parent=0 // pred_region
    _
  $region17: #{tpu_custom_call.1} parent=0 // pred_fallthru
    _
  // Predicated region
  $region18: #{tpu_custom_call.1} parent=0 // pred_check
    _
  $region19: #{tpu_custom_call.1} parent=0 // pred_check_branch
    %24 = sbr.rel (0) target = $region21
  $region20: #{tpu_custom_call.1} parent=0 // pred_region
    _
  $region21: #{tpu_custom_call.1} parent=0 // pred_fallthru
    _
  // Predicated region
  $region22: #{tpu_custom_call.1} parent=0 // pred_check
    _
  $region23: #{tpu_custom_call.1} parent=0 // pred_check_branch
    %26 = sbr.rel (0) target = $region25
  $region24: #{tpu_custom_call.1} parent=0 // pred_region
    _
  $region25: #{tpu_custom_call.1} parent=0 // pred_fallthru
    _
  // Predicated region
  $region26: #{tpu_custom_call.1} parent=0 // pred_check
    _
  $region27: #{tpu_custom_call.1} parent=0 // pred_check_branch
    %28 = sbr.rel (0) target = $region29
  $region28: #{tpu_custom_call.1} parent=0 // pred_region
    _
  $region29: #{tpu_custom_call.1} parent=0 // pred_fallthru
    _
  // Predicated region
  $region30: #{tpu_custom_call.1} parent=0 // pred_check
    _
  $region31: #{tpu_custom_call.1} parent=0 // pred_check_branch
    %30 = sbr.rel (0) target = $region33
  $region32: #{tpu_custom_call.1} parent=0 // pred_region
    _
  $region33: #{tpu_custom_call.1} parent=0 // pred_fallthru
    _
  // Predicated region
  $region34: #{tpu_custom_call.1} parent=0 // pred_check
    _
  $region35: #{tpu_custom_call.1} parent=0 // pred_check_branch
    %32 = sbr.rel (0) target = $region37
  $region36: #{tpu_custom_call.1} parent=0 // pred_region
    _
  $region37: #{tpu_custom_call.1} parent=0 // pred_fallthru
    _
  // Predicated region
  $region38: #{tpu_custom_call.1} parent=0 // pred_check
    _
  $region39: #{tpu_custom_call.1} parent=0 // pred_check_branch
    %34 = sbr.rel (0) target = $region41
  $region40: #{tpu_custom_call.1} parent=0 // pred_region
    _
  $region41: #{tpu_custom_call.1} parent=0 // pred_fallthru
    _
  %v35 = vld [vmem:[%s0] sm:$0xff]
  %v36 = vld [vmem:[%s0 + $0x8] sm:$0xff]
  %v37 = vld [vmem:[%s0 + $0x10] sm:$0xff]
  %v38 = vld [vmem:[%s0 + $0x18] sm:$0xff]
  %v39 = vld [vmem:[%s5] sm:$0xff]
  %v40 = vld [vmem:[%s5 + $0x8] sm:$0xff]
  %v41 = vld [vmem:[%s5 + $0x10] sm:$0xff]
  %v42 = vld [vmem:[%s5 + $0x18] sm:$0xff]
  %v43 = vld [vmem:[%s5 + $0x20] sm:$0xff]
  %v44 = vld [vmem:[%s5 + $0x28] sm:$0xff]
  %v45 = vld [vmem:[%s5 + $0x30] sm:$0xff]
  %v46 = vld [vmem:[%s5 + $0x38] sm:$0xff]
  %v47 = vld [vmem:[%s5 + $0x40] sm:$0xff]
  %v48 = vld [vmem:[%s5 + $0x48] sm:$0xff]
  %v49 = vld [vmem:[%s5 + $0x50] sm:$0xff]
  %v50 = vld [vmem:[%s5 + $0x58] sm:$0xff]
  %v51 = vld [vmem:[%s5 + $0x60] sm:$0xff]
  %v52 = vld [vmem:[%s5 + $0x68] sm:$0xff]
  %v53 = vld [vmem:[%s5 + $0x70] sm:$0xff]
  %v54 = vld [vmem:[%s5 + $0x78] sm:$0xff]
  %v55 = vld [vmem:[%s5 + $0x80] sm:$0xff]
  %v56 = vld [vmem:[%s5 + $0x88] sm:$0xff]
  %v57 = vld [vmem:[%s5 + $0x90] sm:$0xff]
  %v58 = vld [vmem:[%s5 + $0x98] sm:$0xff]
  %v59 = vld [vmem:[%s5 + $0xa0] sm:$0xff]
  %v60 = vld [vmem:[%s5 + $0xa8] sm:$0xff]
  %v61 = vld [vmem:[%s5 + $0xb0] sm:$0xff]
  %v62 = vld [vmem:[%s5 + $0xb8] sm:$0xff]
  %v63 = vld [vmem:[%s5 + $0xc0] sm:$0xff]
  %v64 = vld [vmem:[%s1] sm:$0xff]
  %v65 = vld [vmem:[%s1 + $0x8] sm:$0xff]
  %v66 = vld [vmem:[%s1 + $0x10] sm:$0xff]
  %v67 = vld [vmem:[%s1 + $0x18] sm:$0xff]
  %v68 = vld [vmem:[%s6] sm:$0xff]
  %v69 = vld [vmem:[%s6 + $0x8] sm:$0xff]
  %v70 = vld [vmem:[%s6 + $0x10] sm:$0xff]
  %v71 = vld [vmem:[%s6 + $0x18] sm:$0xff]
  %v72 = vld [vmem:[%s6 + $0x20] sm:$0xff]
  %v73 = vld [vmem:[%s6 + $0x28] sm:$0xff]
  %v74 = vld [vmem:[%s6 + $0x30] sm:$0xff]
  %v75 = vld [vmem:[%s6 + $0x38] sm:$0xff]
  %v76 = vld [vmem:[%s6 + $0x40] sm:$0xff]
  %v77 = vld [vmem:[%s6 + $0x48] sm:$0xff]
  %v78 = vld [vmem:[%s6 + $0x50] sm:$0xff]
  %v79 = vld [vmem:[%s6 + $0x58] sm:$0xff]
  %v80 = vld [vmem:[%s6 + $0x60] sm:$0xff]
  %v81 = vld [vmem:[%s6 + $0x68] sm:$0xff]
  %v82 = vld [vmem:[%s6 + $0x70] sm:$0xff]
  %v83 = vld [vmem:[%s6 + $0x78] sm:$0xff]
  %v84 = vld [vmem:[%s6 + $0x80] sm:$0xff]
  %v85 = vld [vmem:[%s6 + $0x88] sm:$0xff]
  %v86 = vld [vmem:[%s6 + $0x90] sm:$0xff]
  %v87 = vld [vmem:[%s6 + $0x98] sm:$0xff]
  %v88 = vld [vmem:[%s6 + $0xa0] sm:$0xff]
  %v89 = vld [vmem:[%s6 + $0xa8] sm:$0xff]
  %v90 = vld [vmem:[%s6 + $0xb0] sm:$0xff]
  %v91 = vld [vmem:[%s6 + $0xb8] sm:$0xff]
  %v92 = vld [vmem:[%s6 + $0xc0] sm:$0xff]
  %vm93 = vcmask 588800
  %v95 = vsel %vm93, %v65, 0
  %v98 = vsel %vm93, %v67, 0
  %100 = vmatprep.subr.mxu0 0.0
  %101 = vmatpush1.msra.mxu0 %v68
  %102 = vmatprep.subr.mxu0 0.0
  %103 = vmatpush1.msra.mxu0 %v69
  %104 = vmatprep.subr.mxu0 0.0
  %105 = vmatpush1.msra.mxu0 %v70
  %106 = vmatprep.subr.mxu0 0.0
  %107 = vmatpush1.msra.mxu0 %v71
  %108 = vmatprep.subr.mxu0 0.0
  %109 = vmatpush1.msra.mxu0 %v72
  %110 = vmatprep.subr.mxu0 0.0
  %111 = vmatpush1.msra.mxu0 %v73
  %112 = vmatprep.subr.mxu0 0.0
  %113 = vmatpush1.msra.mxu0 %v74
  %114 = vmatprep.subr.mxu0 0.0
  %115 = vmatpush1.msra.mxu0 %v75
  %116 = vmatprep.subr.mxu0 0.0
  %117 = vmatpush1.msra.mxu0 %v76
  %118 = vmatprep.subr.mxu0 0.0
  %119 = vmatpush1.msra.mxu0 %v77
  %120 = vmatprep.subr.mxu0 0.0
  %121 = vmatpush1.msra.mxu0 %v78
  %122 = vmatprep.subr.mxu0 0.0
  %123 = vmatpush1.msra.mxu0 %v79
  %124 = vmatprep.subr.mxu0 0.0
  %125 = vmatpush1.msra.mxu0 %v80
  %126 = vmatprep.subr.mxu0 0.0
  %127 = vmatpush1.msra.mxu0 %v81
  %128 = vmatprep.subr.mxu0 0.0
  %129 = vmatpush1.msra.mxu0 %v82
  %130 = vmatprep.subr.mxu0 0.0
  %131 = vmatpush1.msra.mxu0 %v83
  %132 = vmatprep.subr.mxu0 0.0
  %133 = vmatpush1.msra.mxu0 %v84
  %134 = vmatprep.subr.mxu0 0.0
  %135 = vmatpush1.msra.mxu0 %v85
  %136 = vmatprep.subr.mxu0 0.0
  %137 = vmatpush1.msra.mxu0 %v86
  %138 = vmatprep.subr.mxu0 0.0
  %139 = vmatpush1.msra.mxu0 %v87
  %140 = vmatprep.subr.mxu0 0.0
  %141 = vmatpush1.msra.mxu0 %v88
  %142 = vmatprep.subr.mxu0 0.0
  %143 = vmatpush1.msra.mxu0 %v89
  %144 = vmatprep.subr.mxu0 0.0
  %145 = vmatpush1.msra.mxu0 %v90
  %146 = vmatprep.subr.mxu0 0.0
  %147 = vmatpush1.msra.mxu0 %v91
  %148 = vmatprep.subr.mxu0 0.0
  %149 = vmatpush1.msra.mxu0 %v92
  %150 = vmatprep.subr.mxu0 0.0
  %151 = vmatpush1.msra.mxu0 0.0
  %152 = vmatprep.subr.mxu0 0.0
  %153 = vmatpush1.msra.mxu0 0.0
  %154 = vmatprep.subr.mxu0 0.0
  %155 = vmatpush1.msra.mxu0 0.0
  %156 = vmatprep.subr.mxu0 0.0
  %157 = vmatpush1.msra.mxu0 0.0
  %158 = vmatprep.subr.mxu0 0.0
  %159 = vmatpush1.msra.mxu0 0.0
  %160 = vmatprep.subr.mxu0 0.0
  %161 = vmatpush1.msra.mxu0 0.0
  %162 = vmatprep.subr.mxu0 0.0
  %163 = vmatpush1.msra.mxu0 0.0
  %164 = vmatprep.mubr.f32.mxu0 %v95
  %165 = vmatmul.mubr.f32.gmra.mrb[0].mxu0 %v64
  %v166 = vpop.f32.mrb[0].mxu0
  %v167 = vadd.f32 0.0, %v166
  %v168 = vpop.f32.mrb[0].mxu0
  %169 = vmatprep.mubr.f32.mxu0 %v98
  %170 = vmatmul.mubr.f32.gmra.mrb[0].mxu0 %v66
  %v171 = vpop.f32.mrb[0].mxu0
  %v172 = vadd.f32 0.0, %v171
  %v173 = vpop.f32.mrb[0].mxu0
  %174 = vdwg.mxu0
  %v176 = vsel %vm93, %v36, 0
  %v179 = vsel %vm93, %v38, 0
  %181 = vmatprep.subr.mxu0 0.0
  %182 = vmatpush1.msra.mxu0 %v39
  %183 = vmatprep.subr.mxu0 0.0
  %184 = vmatpush1.msra.mxu0 %v40
  %185 = vmatprep.subr.mxu0 0.0
  %186 = vmatpush1.msra.mxu0 %v41
  %187 = vmatprep.subr.mxu0 0.0
  %188 = vmatpush1.msra.mxu0 %v42
  %189 = vmatprep.subr.mxu0 0.0
  %190 = vmatpush1.msra.mxu0 %v43
  %191 = vmatprep.subr.mxu0 0.0
  %192 = vmatpush1.msra.mxu0 %v44
  %193 = vmatprep.subr.mxu0 0.0
  %194 = vmatpush1.msra.mxu0 %v45
  %195 = vmatprep.subr.mxu0 0.0
  %196 = vmatpush1.msra.mxu0 %v46
  %197 = vmatprep.subr.mxu0 0.0
  %198 = vmatpush1.msra.mxu0 %v47
  %199 = vmatprep.subr.mxu0 0.0
  %200 = vmatpush1.msra.mxu0 %v48
  %201 = vmatprep.subr.mxu0 0.0
  %202 = vmatpush1.msra.mxu0 %v49
  %203 = vmatprep.subr.mxu0 0.0
  %204 = vmatpush1.msra.mxu0 %v50
  %205 = vmatprep.subr.mxu0 0.0
  %206 = vmatpush1.msra.mxu0 %v51
  %207 = vmatprep.subr.mxu0 0.0
  %208 = vmatpush1.msra.mxu0 %v52
  %209 = vmatprep.subr.mxu0 0.0
  %210 = vmatpush1.msra.mxu0 %v53
  %211 = vmatprep.subr.mxu0 0.0
  %212 = vmatpush1.msra.mxu0 %v54
  %213 = vmatprep.subr.mxu0 0.0
  %214 = vmatpush1.msra.mxu0 %v55
  %215 = vmatprep.subr.mxu0 0.0
  %216 = vmatpush1.msra.mxu0 %v56
  %217 = vmatprep.subr.mxu0 0.0
  %218 = vmatpush1.msra.mxu0 %v57
  %219 = vmatprep.subr.mxu0 0.0
  %220 = vmatpush1.msra.mxu0 %v58
  %221 = vmatprep.subr.mxu0 0.0
  %222 = vmatpush1.msra.mxu0 %v59
  %223 = vmatprep.subr.mxu0 0.0
  %224 = vmatpush1.msra.mxu0 %v60
  %225 = vmatprep.subr.mxu0 0.0
  %226 = vmatpush1.msra.mxu0 %v61
  %227 = vmatprep.subr.mxu0 0.0
  %228 = vmatpush1.msra.mxu0 %v62
  %229 = vmatprep.subr.mxu0 0.0
  %230 = vmatpush1.msra.mxu0 %v63
  %231 = vmatprep.subr.mxu0 0.0
  %232 = vmatpush1.msra.mxu0 0.0
  %233 = vmatprep.subr.mxu0 0.0
  %234 = vmatpush1.msra.mxu0 0.0
  %235 = vmatprep.subr.mxu0 0.0
  %236 = vmatpush1.msra.mxu0 0.0
  %237 = vmatprep.subr.mxu0 0.0
  %238 = vmatpush1.msra.mxu0 0.0
  %239 = vmatprep.subr.mxu0 0.0
  %240 = vmatpush1.msra.mxu0 0.0
  %241 = vmatprep.subr.mxu0 0.0
  %242 = vmatpush1.msra.mxu0 0.0
  %243 = vmatprep.subr.mxu0 0.0
  %244 = vmatpush1.msra.mxu0 0.0
  %245 = vmatprep.mubr.f32.mxu0 %v176
  %246 = vmatmul.mubr.f32.gmra.mrb[0].mxu0 %v35
  %v247 = vpop.f32.mrb[0].mxu0
  %v248 = vadd.f32 %v167, %v247
  %v249 = vpop.f32.mrb[0].mxu0
  %250 = vmatprep.mubr.f32.mxu0 %v179
  %251 = vmatmul.mubr.f32.gmra.mrb[0].mxu0 %v37
  %v252 = vpop.f32.mrb[0].mxu0
  %v253 = vadd.f32 %v172, %v252
  %v254 = vpop.f32.mrb[0].mxu0
  %255 = vdwg.mxu0
  %v256 = vld [vmem:[%s2] sm:$0xff]
  %v257 = vld [vmem:[%s2 + $0x8] sm:$0xff]
  %v258 = vld [vmem:[%s7] sm:$0x1]
  %260 = vset.pattern.permute.xlu0 0
  %261 = vperm.xlu0 %260, %v256
  %v262 = vpop.permute.xlu0 %261
  %265 = vset.pattern.permute.xlu0 0
  %266 = vperm.xlu0 %265, %v257
  %v267 = vpop.permute.xlu0 %266
  %v270 = vlaneseq
  %v271 = vshrl.u32 %v270, 7
  %v272 = vsub.s32 0, %v271
  %v273 = vrot.slane %v258, %v272
  %v275 = vmul.f32 %v262, %v273
  %v276 = vmul.f32 %v267, %v273
  %v277 = vadd.f32 %v248, %v275
  %v278 = vadd.f32 %v253, %v276
  %v279 = vld [vmem:[%s4] sm:$0xff]
  %v280 = vld [vmem:[%s8] sm:$0xff]
  %v281 = vld [vmem:[%s8 + $0x8] sm:$0xff]
  %v282 = vld [vmem:[%s8 + $0x10] sm:$0xff]
  %v283 = vld [vmem:[%s8 + $0x18] sm:$0xff]
  %v284 = vld [vmem:[%s8 + $0x20] sm:$0xff]
  %v285 = vld [vmem:[%s8 + $0x28] sm:$0xff]
  %v286 = vld [vmem:[%s8 + $0x30] sm:$0xff]
  %v287 = vld [vmem:[%s8 + $0x38] sm:$0xff]
  %v288 = vld [vmem:[%s8 + $0x40] sm:$0xff]
  %v289 = vld [vmem:[%s8 + $0x48] sm:$0xff]
  %v290 = vld [vmem:[%s8 + $0x50] sm:$0x1]
  %vm291 = vcmask 662528
  %v293 = vsel %vm291, %v279, 0
  %vm295 = vcmask 1040384
  %v297 = vsel %vm295, %v290, 0
  %299 = vmatprep.subr.mxu0 0.0
  %300 = vmatpush1.msra.mxu0 %v280
  %301 = vmatprep.subr.mxu0 0.0
  %302 = vmatpush1.msra.mxu0 %v281
  %303 = vmatprep.subr.mxu0 0.0
  %304 = vmatpush1.msra.mxu0 %v282
  %305 = vmatprep.subr.mxu0 0.0
  %306 = vmatpush1.msra.mxu0 %v283
  %307 = vmatprep.subr.mxu0 0.0
  %308 = vmatpush1.msra.mxu0 %v284
  %309 = vmatprep.subr.mxu0 0.0
  %310 = vmatpush1.msra.mxu0 %v285
  %311 = vmatprep.subr.mxu0 0.0
  %312 = vmatpush1.msra.mxu0 %v286
  %313 = vmatprep.subr.mxu0 0.0
  %314 = vmatpush1.msra.mxu0 %v287
  %315 = vmatprep.subr.mxu0 0.0
  %316 = vmatpush1.msra.mxu0 %v288
  %317 = vmatprep.subr.mxu0 0.0
  %318 = vmatpush1.msra.mxu0 %v289
  %319 = vmatprep.subr.mxu0 0.0
  %320 = vmatpush1.msra.mxu0 %v297
  %321 = vmatprep.subr.mxu0 0.0
  %322 = vmatpush1.msra.mxu0 0.0
  %323 = vmatprep.subr.mxu0 0.0
  %324 = vmatpush1.msra.mxu0 0.0
  %325 = vmatprep.subr.mxu0 0.0
  %326 = vmatpush1.msra.mxu0 0.0
  %327 = vmatprep.subr.mxu0 0.0
  %328 = vmatpush1.msra.mxu0 0.0
  %329 = vmatprep.subr.mxu0 0.0
  %330 = vmatpush1.msra.mxu0 0.0
  %331 = vmatprep.subr.mxu0 0.0
  %332 = vmatpush1.msra.mxu0 0.0
  %333 = vmatprep.subr.mxu0 0.0
  %334 = vmatpush1.msra.mxu0 0.0
  %335 = vmatprep.subr.mxu0 0.0
  %336 = vmatpush1.msra.mxu0 0.0
  %337 = vmatprep.subr.mxu0 0.0
  %338 = vmatpush1.msra.mxu0 0.0
  %339 = vmatprep.subr.mxu0 0.0
  %340 = vmatpush1.msra.mxu0 0.0
  %341 = vmatprep.subr.mxu0 0.0
  %342 = vmatpush1.msra.mxu0 0.0
  %343 = vmatprep.subr.mxu0 0.0
  %344 = vmatpush1.msra.mxu0 0.0
  %345 = vmatprep.subr.mxu0 0.0
  %346 = vmatpush1.msra.mxu0 0.0
  %347 = vmatprep.subr.mxu0 0.0
  %348 = vmatpush1.msra.mxu0 0.0
  %349 = vmatprep.subr.mxu0 0.0
  %350 = vmatpush1.msra.mxu0 0.0
  %351 = vmatprep.subr.mxu0 0.0
  %352 = vmatpush1.msra.mxu0 0.0
  %353 = vmatprep.subr.mxu0 0.0
  %354 = vmatpush1.msra.mxu0 0.0
  %355 = vmatprep.subr.mxu0 0.0
  %356 = vmatpush1.msra.mxu0 0.0
  %357 = vmatprep.subr.mxu0 0.0
  %358 = vmatpush1.msra.mxu0 0.0
  %359 = vmatprep.subr.mxu0 0.0
  %360 = vmatpush1.msra.mxu0 0.0
  %361 = vmatprep.subr.mxu0 0.0
  %362 = vmatpush1.msra.mxu0 0.0
  %363 = vmatprep.mubr.f32.mxu0 0.0
  %364 = vmatmul.mubr.f32.gmra.mrb[0].mxu0 %v293
  %v365 = vpop.f32.mrb[0].mxu0
  %v366 = vadd.f32 0.0, %v365
  %v367 = vpop.f32.mrb[0].mxu0
  %368 = vdwg.mxu0
  %v369 = vlaneseq
  %v370 = vand.u32 %v369, 127
  %v371 = vld [vmem:[%s3] sm:$0xff]
  %v372 = vld [vmem:[%s3 + $0x8] sm:$0xff]
  %373 = vset.pattern.permute.xlu0 0
  %374 = vperm.xlu0 %373, %v371
  %v375 = vpop.permute.xlu0 %374
  %376 = vset.pattern.permute.xlu0 0
  %377 = vperm.xlu0 %376, %v372
  %v378 = vpop.permute.xlu0 %377
  %vm379 = vcmp.eq.s32.totalorder %v375, %v370
  %vm380 = vcmp.eq.s32.totalorder %v378, %v370
  %v381 = vsel %vm379, 1, 0
  %v382 = vsel %vm380, 1, 0
  %v383 = vcvt.s32.f32 %v381
  %v384 = vcvt.s32.f32 %v382
  %vm385 = vcmask 64512
  %v387 = vsel %vm385, %v383, 0
  %v390 = vsel %vm385, %v384, 0
  %392 = vmatprep.subr.mxu0 0.0
  %393 = vmatpush1.msra.mxu0 %v366
  %394 = vmatprep.subr.mxu0 0.0
  %395 = vmatpush1.msra.mxu0 0.0
  %396 = vmatprep.subr.mxu0 0.0
  %397 = vmatpush1.msra.mxu0 0.0
  %398 = vmatprep.subr.mxu0 0.0
  %399 = vmatpush1.msra.mxu0 0.0
  %400 = vmatprep.subr.mxu0 0.0
  %401 = vmatpush1.msra.mxu0 0.0
  %402 = vmatprep.subr.mxu0 0.0
  %403 = vmatpush1.msra.mxu0 0.0
  %404 = vmatprep.subr.mxu0 0.0
  %405 = vmatpush1.msra.mxu0 0.0
  %406 = vmatprep.subr.mxu0 0.0
  %407 = vmatpush1.msra.mxu0 0.0
  %408 = vmatprep.subr.mxu0 0.0
  %409 = vmatpush1.msra.mxu0 0.0
  %410 = vmatprep.subr.mxu0 0.0
  %411 = vmatpush1.msra.mxu0 0.0
  %412 = vmatprep.subr.mxu0 0.0
  %413 = vmatpush1.msra.mxu0 0.0
  %414 = vmatprep.subr.mxu0 0.0
  %415 = vmatpush1.msra.mxu0 0.0
  %416 = vmatprep.subr.mxu0 0.0
  %417 = vmatpush1.msra.mxu0 0.0
  %418 = vmatprep.subr.mxu0 0.0
  %419 = vmatpush1.msra.mxu0 0.0
  %420 = vmatprep.subr.mxu0 0.0
  %421 = vmatpush1.msra.mxu0 0.0
  %422 = vmatprep.subr.mxu0 0.0
  %423 = vmatpush1.msra.mxu0 0.0
  %424 = vmatprep.subr.mxu0 0.0
  %425 = vmatpush1.msra.mxu0 0.0
  %426 = vmatprep.subr.mxu0 0.0
  %427 = vmatpush1.msra.mxu0 0.0
  %428 = vmatprep.subr.mxu0 0.0
  %429 = vmatpush1.msra.mxu0 0.0
  %430 = vmatprep.subr.mxu0 0.0
  %431 = vmatpush1.msra.mxu0 0.0
  %432 = vmatprep.subr.mxu0 0.0
  %433 = vmatpush1.msra.mxu0 0.0
  %434 = vmatprep.subr.mxu0 0.0
  %435 = vmatpush1.msra.mxu0 0.0
  %436 = vmatprep.subr.mxu0 0.0
  %437 = vmatpush1.msra.mxu0 0.0
  %438 = vmatprep.subr.mxu0 0.0
  %439 = vmatpush1.msra.mxu0 0.0
  %440 = vmatprep.subr.mxu0 0.0
  %441 = vmatpush1.msra.mxu0 0.0
  %442 = vmatprep.subr.mxu0 0.0
  %443 = vmatpush1.msra.mxu0 0.0
  %444 = vmatprep.subr.mxu0 0.0
  %445 = vmatpush1.msra.mxu0 0.0
  %446 = vmatprep.subr.mxu0 0.0
  %447 = vmatpush1.msra.mxu0 0.0
  %448 = vmatprep.subr.mxu0 0.0
  %449 = vmatpush1.msra.mxu0 0.0
  %450 = vmatprep.subr.mxu0 0.0
  %451 = vmatpush1.msra.mxu0 0.0
  %452 = vmatprep.subr.mxu0 0.0
  %453 = vmatpush1.msra.mxu0 0.0
  %454 = vmatprep.subr.mxu0 0.0
  %455 = vmatpush1.msra.mxu0 0.0
  %456 = vmatprep.mubr.f32.mxu0 0.0
  %457 = vmatmul.mubr.f32.gmra.mrb[0].mxu0 %v387
  %v458 = vpop.f32.mrb[0].mxu0
  %v459 = vadd.f32 0.0, %v458
  %v460 = vpop.f32.mrb[0].mxu0
  %461 = vmatprep.mubr.f32.mxu0 0.0
  %462 = vmatmul.mubr.f32.gmra.mrb[0].mxu0 %v390
  %v463 = vpop.f32.mrb[0].mxu0
  %v464 = vadd.f32 0.0, %v463
  %v465 = vpop.f32.mrb[0].mxu0
  %466 = vdwg.mxu0
  %v467 = vadd.f32 %v277, %v459
  %v468 = vadd.f32 %v278, %v464
  %v469 = vld [vmem:[%s9] sm:$0x1]
  %v471 = vlaneseq
  %v472 = vshrl.u32 %v471, 7
  %v473 = vsub.s32 0, %v472
  %v474 = vrot.slane %v469, %v473
  %v476 = vadd.f32 %v467, %v474
  %v477 = vadd.f32 %v468, %v474
  %vm478 = vcmask 31744
  %479 = vst.msk [vmem:[%s10] sm:$0xff] %vm478, %v476
  %480 = vst.msk [vmem:[%s10 + $0x8] sm:$0xff] %vm478, %v477
  // Predicated region
  $region42: #{tpu_custom_call.1} parent=0 // pred_check
    _
  $region43: #{tpu_custom_call.1} parent=0 // pred_check_branch
    %482 = sbr.rel (0) target = $region45
  $region44: #{tpu_custom_call.1} parent=0 // pred_region
    _
  $region45: #{tpu_custom_call.1} parent=0 // pred_fallthru
    _
  // Predicated region
  $region46: #{tpu_custom_call.1} parent=0 // pred_check
    _
  $region47: #{tpu_custom_call.1} parent=0 // pred_check_branch
    %484 = sbr.rel (0) target = $region49
  $region48: #{tpu_custom_call.1} parent=0 // pred_region
    _
  $region49: #{tpu_custom_call.1} parent=0 // pred_fallthru
    _

</llo_original>
